<compile_context>
chip_gen: v6e
topology: v6e:2x2x1
jax: 0.10.0
libtpu: 0.0.40
codegen_flags: <defaults>
</compile_context>

<pallas_src>
import functools

import jax
import jax.numpy as jnp
from jax import lax
from jax.experimental import pallas as pl
from jax.experimental.pallas import tpu as pltpu


def _cls_loss_kernel(logits_ref, labels_ref, out_ref, *, label_smoothing,
                     num_rows, block_rows):
    # logits_ref: (TB, C) native dtype; labels_ref: (TB, 1) int32
    # out_ref:    (1, 128) f32 -- this tile's partial loss sum broadcast to lanes
    i = pl.program_id(0)

    logits = logits_ref[...]                                 # (TB, C) native dtype
    labels = labels_ref[...]                                  # (TB, 1) int32
    tb, c = logits.shape

    # Row max / shift in the native dtype (packed bf16 VPU ops for bf16 inputs).
    m = jnp.max(logits, axis=-1, keepdims=True)               # (TB, 1)
    shifted = logits - m                                       # (TB, C) native

    # f32 only at the exp + accumulate boundary (numerically-stable LSE).
    shifted_f32 = shifted.astype(jnp.float32)                  # (TB, C) f32
    lse = jnp.log(jnp.sum(jnp.exp(shifted_f32), axis=-1, keepdims=True))  # (TB, 1)

    # shifted[b, label_b]: compare + select in native dtype (one nonzero/row),
    # cast the per-row result to f32.
    classes = lax.broadcasted_iota(jnp.int32, (tb, c), 1)
    picked = jnp.sum(jnp.where(classes == labels, shifted, jnp.zeros_like(shifted)),
                     axis=-1, keepdims=True).astype(jnp.float32)          # (TB, 1)

    eps = float(label_smoothing)
    if eps > 0.0:
        sum_shifted = jnp.sum(shifted_f32, axis=-1, keepdims=True)        # (TB, 1)
        loss = lse - (1.0 - eps) * picked - (eps / c) * sum_shifted
    else:
        loss = lse - picked                                               # (TB, 1)

    # Mask rows of the (possibly ragged) last tile that lie beyond the true B.
    if num_rows % block_rows != 0:
        rows = lax.broadcasted_iota(jnp.int32, (tb, 1), 0) + i * block_rows
        loss = jnp.where(rows < num_rows, loss, 0.0)

    tile_sum = jnp.sum(loss)
    out_ref[...] = jnp.full(out_ref.shape, tile_sum, dtype=jnp.float32)


def _tpu_generation():
    """Best-effort TPU generation from device_kind (0 if unknown / non-TPU)."""
    try:
        kind = jax.devices()[0].device_kind.lower()
    except Exception:
        return 0
    for gen in (7, 6, 5, 4, 3, 2):
        if "v%d" % gen in kind:
            return gen
    return 0


def _vmem_budget(gen):
    """(working-set budget for tile sizing, vmem_limit_bytes for Mosaic)."""
    if gen >= 7:            # v7x: 64 MiB physical VMEM per TC
        return 32 * 1024 * 1024, 48 * 1024 * 1024
    if gen in (4, 5, 6):    # 128 MiB physical VMEM
        return 64 * 1024 * 1024, 96 * 1024 * 1024
    return 16 * 1024 * 1024, 32 * 1024 * 1024   # unknown / older: conservative


def _choose_block_rows(batch, num_classes, itemsize, working_budget_bytes,
                       max_rows=65536):
    """Largest multiple-of-8 row tile whose full VMEM working set fits budget."""
    c_pad = ((num_classes + 127) // 128) * 128
    # Per-row VMEM bytes:
    #   2x double-buffered logits block (lane-padded)  : 2 * c_pad * itemsize
    #   2x lane-padded (tb, 1) int32 labels block      : 2 * 128 * 4
    #   ~4 f32 (tb, C) temporaries (shifted_f32, exp,
    #     select product, slack)                        : 4 * c_pad * 4
    per_row = 2 * c_pad * itemsize + 2 * 128 * 4 + 4 * c_pad * 4
    rows = working_budget_bytes // max(per_row, 1)
    rows = max(8, min(int(rows), max_rows))
    rows = (rows // 8) * 8
    batch_pad = ((batch + 7) // 8) * 8
    return max(8, min(rows, batch_pad))


def cls_loss(preds, labels, label_smoothing=0.0, block_rows=None):
    """Pallas equivalent of ClsLoss.forward. Returns {'cls_loss': scalar}."""
    cls_logit = preds["cls_logit"]                 # (B, C), f32 or bf16
    cls_label = labels["cls_label"]                # (B,) int
    B, C = cls_logit.shape
    labels2d = cls_label.astype(jnp.int32).reshape(B, 1)

    itemsize = jnp.dtype(cls_logit.dtype).itemsize
    gen = _tpu_generation()
    working_budget, vmem_limit = _vmem_budget(gen)

    if block_rows is None:
        tb = _choose_block_rows(B, C, itemsize, working_budget)
        # v7x: two TensorCores share HBM; make sure the "parallel" batch axis
        # yields >= 2 tiles so both cores get work on the memory-bound path.
        if gen >= 7 and B > 8:
            half = max(8, ((-(-B // 2)) + 7) // 8 * 8)
            tb = min(tb, half)
    else:
        tb = max(8, (int(block_rows) // 8) * 8)
    num_tiles = -(-B // tb)

    kernel = functools.partial(
        _cls_loss_kernel,
        label_smoothing=label_smoothing,
        num_rows=B,
        block_rows=tb,
    )

    cost = pl.CostEstimate(
        flops=6 * B * C,
        transcendentals=B * C,
        bytes_accessed=B * C * itemsize + B * 4 + num_tiles * 128 * 4,
    )

    partials = pl.pallas_call(
        kernel,
        out_shape=jax.ShapeDtypeStruct((num_tiles, 128), jnp.float32),
        grid=(num_tiles,),
        in_specs=[
            pl.BlockSpec((tb, C), lambda i: (i, 0)),
            pl.BlockSpec((tb, 1), lambda i: (i, 0)),
        ],
        out_specs=pl.BlockSpec((1, 128), lambda i: (i, 0)),
        compiler_params=pltpu.CompilerParams(
            dimension_semantics=("parallel",),
            vmem_limit_bytes=vmem_limit,
        ),
        cost_estimate=cost,
    )(cls_logit, labels2d)

    total = jnp.sum(partials[:, 0])
    return {"cls_loss": total / jnp.float32(B)}


def _reference_cls_loss(logits, label, label_smoothing=0.0):
    logits = logits.astype(jnp.float32)
    _, C = logits.shape
    logp = jax.nn.log_softmax(logits, axis=-1)
    onehot = jax.nn.one_hot(label, C, dtype=jnp.float32)
    if label_smoothing > 0:
        target = onehot * (1.0 - label_smoothing) + label_smoothing / C
    else:
        target = onehot
    return jnp.mean(-jnp.sum(target * logp, axis=-1))


if __name__ == "__main__":
    key = jax.random.PRNGKey(0)
    k1, k2, k3, k4, k5, k6, k7, k8 = jax.random.split(key, 8)

    # Case 1: small single-tile (batch=8, classes=32), plain CE and smoothed CE.
    B, C = 8, 32
    logit1 = jax.random.normal(k1, (B, C), dtype=jnp.float32)
    label1 = jax.random.randint(k2, (B,), 0, C, dtype=jnp.int32)
    preds1, labs1 = {"cls_logit": logit1}, {"cls_label": label1}

    loss1 = jax.block_until_ready(cls_loss(preds1, labs1, 0.0)["cls_loss"])
    ref1 = _reference_cls_loss(logit1, label1, 0.0)
    assert jnp.allclose(loss1, ref1, atol=1e-5, rtol=1e-5), (loss1, ref1)

    loss1s = jax.block_until_ready(cls_loss(preds1, labs1, 0.1)["cls_loss"])
    ref1s = _reference_cls_loss(logit1, label1, 0.1)
    assert jnp.allclose(loss1s, ref1s, atol=1e-5, rtol=1e-5), (loss1s, ref1s)

    # Case 2: multi-tile grid with a ragged last tile (batch=24, classes=128,
    # forced block_rows=16) to exercise pipelining + the in-kernel row mask.
    B2, C2 = 24, 128
    logit2 = jax.random.normal(k3, (B2, C2), dtype=jnp.float32)
    label2 = jax.random.randint(k4, (B2,), 0, C2, dtype=jnp.int32)
    preds2, labs2 = {"cls_logit": logit2}, {"cls_label": label2}

    loss2 = jax.block_until_ready(
        cls_loss(preds2, labs2, 0.1, block_rows=16)["cls_loss"])
    ref2 = _reference_cls_loss(logit2, label2, 0.1)
    assert jnp.allclose(loss2, ref2, atol=1e-5, rtol=1e-5), (loss2, ref2)

    # Case 3: auto tile sizing (generation-aware budget + v7x >=2-tile clamp).
    B3, C3 = 40, 64
    logit3 = jax.random.normal(k5, (B3, C3), dtype=jnp.float32)
    label3 = jax.random.randint(k6, (B3,), 0, C3, dtype=jnp.int32)
    preds3, labs3 = {"cls_logit": logit3}, {"cls_label": label3}

    loss3 = jax.block_until_ready(cls_loss(preds3, labs3, 0.0)["cls_loss"])
    ref3 = _reference_cls_loss(logit3, label3, 0.0)
    assert jnp.allclose(loss3, ref3, atol=1e-5, rtol=1e-5), (loss3, ref3)

    # Case 4: bf16 logits exercise the native-dtype (packed bf16) compute path.
    B4, C4 = 32, 256
    logit4 = jax.random.normal(k7, (B4, C4), dtype=jnp.float32).astype(jnp.bfloat16)
    label4 = jax.random.randint(k8, (B4,), 0, C4, dtype=jnp.int32)
    preds4, labs4 = {"cls_logit": logit4}, {"cls_label": label4}

    loss4 = jax.block_until_ready(
        cls_loss(preds4, labs4, 0.1, block_rows=8)["cls_loss"])
    ref4 = _reference_cls_loss(logit4.astype(jnp.float32), label4, 0.1)
    assert jnp.allclose(loss4, ref4, atol=5e-2, rtol=5e-2), (loss4, ref4)

    print("KERNEL_OK")
</pallas_src>

<mosaic_0001>
module attributes {stable_mosaic.version = 11 : i64} {
  func.func @_cls_loss_kernel(%arg0: i32, %arg1: memref<8x32xf32, #tpu.memory_space<vmem>>, %arg2: memref<8x1xi32, #tpu.memory_space<vmem>>, %arg3: memref<1x128xf32, #tpu.memory_space<vmem>>) attributes {dimension_semantics = [#tpu.dimension_semantics<parallel>], iteration_bounds = array<i64: 1>, scalar_prefetch = 0 : i64, scratch_operands = 0 : i64, tpu.core_type = #tpu.core_type<tc>, window_params = [{transform_indices = @transform_0, window_bounds = array<i64: 8, 32>}, {transform_indices = @transform_1, window_bounds = array<i64: 8, 1>}, {transform_indices = @transform_2, window_bounds = array<i64: 1, 128>}]} {
    %c0 = arith.constant 0 : index
    %c0_0 = arith.constant 0 : index
    %0 = vector.load %arg1[%c0, %c0_0] : memref<8x32xf32, #tpu.memory_space<vmem>>, vector<8x32xf32>
    %c0_1 = arith.constant 0 : index
    %c0_2 = arith.constant 0 : index
    %1 = vector.load %arg2[%c0_1, %c0_2] : memref<8x1xi32, #tpu.memory_space<vmem>>, vector<8x1xi32>
    %cst = arith.constant dense<0xFF800000> : vector<8xf32>
    %2 = vector.multi_reduction <maximumf>, %0, %cst [1] : vector<8x32xf32> to vector<8xf32>
    %3 = vector.shape_cast %2 : vector<8xf32> to vector<8x1xf32>
    %4 = vector.broadcast %3 : vector<8x1xf32> to vector<8x32xf32>
    %5 = arith.subf %0, %4 : vector<8x32xf32>
    %6 = math.exp %5 : vector<8x32xf32>
    %cst_3 = arith.constant dense<0.000000e+00> : vector<8xf32>
    %7 = vector.multi_reduction <add>, %6, %cst_3 [1] : vector<8x32xf32> to vector<8xf32>
    %8 = vector.shape_cast %7 : vector<8xf32> to vector<8x1xf32>
    %9 = math.log %8 : vector<8x1xf32>
    %10 = tpu.iota {dimensions = array<i32: 1>} : vector<8x32xi32>
    %11 = vector.broadcast %1 : vector<8x1xi32> to vector<8x32xi32>
    %12 = arith.cmpi eq, %10, %11 : vector<8x32xi32>
    %cst_4 = arith.constant 0.000000e+00 : f32
    %13 = vector.broadcast %cst_4 : f32 to vector<8x32xf32>
    %14 = arith.select %12, %5, %13 : vector<8x32xi1>, vector<8x32xf32>
    %cst_5 = arith.constant dense<0.000000e+00> : vector<8xf32>
    %15 = vector.multi_reduction <add>, %14, %cst_5 [1] : vector<8x32xf32> to vector<8xf32>
    %16 = vector.shape_cast %15 : vector<8xf32> to vector<8x1xf32>
    %17 = arith.subf %9, %16 : vector<8x1xf32>
    %18 = vector.shape_cast %17 : vector<8x1xf32> to vector<1x8x1xf32>
    %cst_6 = arith.constant dense<0.000000e+00> : vector<1xf32>
    %19 = vector.multi_reduction <add>, %18, %cst_6 [1, 2] : vector<1x8x1xf32> to vector<1xf32>
    %20 = vector.shape_cast %19 : vector<1xf32> to vector<1x1x1xf32>
    %21 = vector.extract %20[0, 0, 0] : f32 from vector<1x1x1xf32>
    %22 = vector.broadcast %21 : f32 to vector<1x128xf32>
    %c0_7 = arith.constant 0 : index
    %c0_8 = arith.constant 0 : index
    %23 = vector.load %arg3[%c0_7, %c0_8] : memref<1x128xf32, #tpu.memory_space<vmem>>, vector<1x128xf32>
    tpu.vector_store %arg3[%c0_7, %c0_8], %22 {strides = array<i32>} : memref<1x128xf32, #tpu.memory_space<vmem>>, vector<1x128xf32>,
    return
  }
  func.func @transform_0(%arg0: i32) -> (i32, i32) {
    %c0_i32 = arith.constant 0 : i32
    %c0_i32_0 = arith.constant 0 : i32
    return %arg0, %c0_i32 : i32, i32
  }
  func.func @transform_1(%arg0: i32) -> (i32, i32) {
    %c0_i32 = arith.constant 0 : i32
    %c0_i32_0 = arith.constant 0 : i32
    return %arg0, %c0_i32 : i32, i32
  }
  func.func @transform_2(%arg0: i32) -> (i32, i32) {
    %c0_i32 = arith.constant 0 : i32
    %c0_i32_0 = arith.constant 0 : i32
    return %arg0, %c0_i32 : i32, i32
  }
}

</mosaic_0001>

<llo_original>
// kernel: tpu_custom_call.1
$region0: #{tpu_custom_call.1}
  #allocation0 [shape = 'u32[]', space=smem, size = 0x4, offset = 0x4, fixed_abs, tag = 'smem constant byte address 0x4 - core index']
  #allocation1 [shape = 'u32[144,128]{1,0:T(1,128)}', space=vmem, size = 0x12000, scoped, tag = 'internal scratch']
  %s0 = inlined_call_operand.vmem [shape: f32[8,32], index: 0, kind: input, shape index: {}]
  %s1 = inlined_call_operand.vmem [shape: s32[8,1], index: 1, kind: input, shape index: {}]
  %s2 = inlined_call_operand.hbm [shape: f32[1,128], index: 2, kind: output, shape index: {}]
  %s3 = sld [smem:[#allocation0]]
  $region18: #{tpu_custom_call.1} parent=0
    _
  %s5 = ssub.s32 1, %s3
  %s6 = scalar_select 0, %s5, %s3
  $region1: #{tpu_custom_call.1} parent=0
    #allocation2 [shape = 'u8[512]{0}', space=vmem, size = 0x400, scoped, tag = 'output window, operand 0, single buffered']
    #allocation3 [shape = 's32[1]{0}', space=sflag, size = 0x4, scoped, tag = 'scoped memory for tpu_custom_call.1']
    %7 = vsyncpa [#allocation3], 0
    // Predicated region
    $region2: #{tpu_custom_call.1} parent=1 // pred_check
      _
    $region3: #{tpu_custom_call.1} parent=1 // pred_check_branch
      %9 = sbr.rel (0) target = $region5
    $region4: #{tpu_custom_call.1} parent=1 // pred_region
      _
    $region5: #{tpu_custom_call.1} parent=1 // pred_fallthru
      _
    // Predicated region
    $region6: #{tpu_custom_call.1} parent=1 // pred_check
      _
    $region7: #{tpu_custom_call.1} parent=1 // pred_check_branch
      %11 = sbr.rel (0) target = $region9
    $region8: #{tpu_custom_call.1} parent=1 // pred_region
      _
    $region9: #{tpu_custom_call.1} parent=1 // pred_fallthru
      _
    %v12 = vld [vmem:[%s0] sm:$0xff]
    %v13 = vld [vmem:[%s1] sm:$0xff]
    %vm14 = vcmask 261120
    %v15 = vsel %vm14, %v12, -inf
    %16 = vmax.xlane.f32.xlu0 %v15
    %v17 = vpop.xlane.xlu0 %16
    %v18 = vsub.f32 %v12, %v17
    %v19 = vmul.f32 %v18, 1.442695
    %v20 = vpow.pop %v19
    %v21 = vsel %vm14, %v20, 0.0
    %22 = vadd.xlane.f32.xlu0 %v21
    %v23 = vpop.xlane.xlu0 %22
    %v24 = vlog2.pop %v23
    %v25 = vmul.f32 %v24, 0.6931472
    %v26 = vlaneseq
    %v27 = vand.u32 %v26, 127
    %28 = vset.pattern.permute.xlu0 0
    %29 = vperm.xlu0 %28, %v13
    %v30 = vpop.permute.xlu0 %29
    %vm31 = vcmp.eq.s32.totalorder %v27, %v30
    %v32 = vsel %vm31, %v18, 0.0
    %v33 = vsel %vm14, %v32, 0.0
    %34 = vadd.xlane.f32.xlu0 %v33
    %v35 = vpop.xlane.xlu0 %34
    %v36 = vsub.f32 %v25, %v35
    %vm37 = vcmask 7168
    %v38 = vsel %vm37, %v36, 0.0
    %39 = vadd.xlane.f32.xlu0 %v38
    %v40 = vpop.xlane.xlu0 %39
    %v41 = vrot.slane %v40, 4
    %v42 = vadd.f32 %v40, %v41
    %v43 = vrot.slane %v42, 2
    %v44 = vadd.f32 %v42, %v43
    %v45 = vrot.slane %v44, 1
    %v46 = vadd.f32 %v44, %v45
    %s47 = vtos %v46
    %v48 = vstv %s47
    %49 = vst [vmem:[#allocation2] sm:$0x1] %v48
    // Predicated region
    $region10: #{tpu_custom_call.1} parent=1 // pred_check
      _
    $region11: #{tpu_custom_call.1} parent=1 // pred_check_branch
      %51 = sbr.rel (0) target = $region13
    $region12: #{tpu_custom_call.1} parent=1 // pred_region
      %s53 = ssub.s32 16, 16
      %54 = vsyncadd [#allocation3], %s53
      %s56 = sshll.u32 [#allocation2], 4
      %s57 = int_to_ptr.vmem [resolvable:$true] %s56
      %59 = dma.vmem_to_hbm [thread:$0]  %s57, 16, %s2, [#allocation3]
    $region13: #{tpu_custom_call.1} parent=1 // pred_fallthru
      _
    // Predicated region
    $region14: #{tpu_custom_call.1} parent=1 // pred_check
      _
    $region15: #{tpu_custom_call.1} parent=1 // pred_check_branch
      %61 = sbr.rel (0) target = $region17
    $region16: #{tpu_custom_call.1} parent=1 // pred_region
      %62 = dma.done [#allocation3], 16
    $region17: #{tpu_custom_call.1} parent=1 // pred_fallthru
      _
    %63 = vsyncpa [#allocation3], 1

</llo_original>
